<compile_context>
chip_gen: v7x
topology: tpu7x:2x2x1
jax: 0.10.0
libtpu: 0.0.40
codegen_flags: <defaults>
</compile_context>

<pallas_src>
import functools

import jax
import jax.numpy as jnp
from jax.experimental import pallas as pl
from jax.experimental.pallas import tpu as pltpu

BN_EPS = 1e-5

_TM_LADDER = (512, 256, 128, 64, 32, 16, 8)
ROW_ALIGN = 512                      # every ladder entry divides this
MIN_GRID_STEPS = 4                   # megacore + prefetch/compute overlap


def _round_up(x, m):
    return ((x + m - 1) // m) * m


# ----------------------------------------------------------------------------
# One-time hardware / feature probes (cached; warmed OUTSIDE jit tracing)
# ----------------------------------------------------------------------------
@functools.lru_cache(maxsize=None)
def _vmem_config():
    """Returns (tile_budget_bytes, vmem_limit_bytes, deep_pipeline_ok)."""
    vmem = None
    try:
        vmem = getattr(pltpu.get_tpu_info(), "vmem_capacity_bytes", None)
    except Exception:
        vmem = None
    if not vmem:
        vmem = 64 * 1024 * 1024                      # conservative (v7x-sized)
    if vmem >= 100 * 1024 * 1024:                    # v5e / v6e: 128 MiB VMEM
        return 56 * 1024 * 1024, 96 * 1024 * 1024, True
    return 20 * 1024 * 1024, 44 * 1024 * 1024, False  # v7x: 64 MiB VMEM


@functools.lru_cache(maxsize=None)
def _buffered_ok():
    """Probe whether pl.BlockSpec(pipeline_mode=pl.Buffered(n)) is supported."""
    try:
        def k(a_ref, w_ref, o_ref):
            o_ref[...] = jnp.dot(a_ref[...], w_ref[...],
                                 preferred_element_type=jnp.float32)

        a = jnp.ones((16, 128), jnp.bfloat16)
        w = jnp.ones((128, 128), jnp.bfloat16)
        f = pl.pallas_call(
            k,
            out_shape=jax.ShapeDtypeStruct((16, 128), jnp.float32),
            grid=(2,),
            in_specs=[pl.BlockSpec((8, 128), lambda i: (i, 0),
                                   pipeline_mode=pl.Buffered(3)),
                      pl.BlockSpec((128, 128), lambda i: (0, 0),
                                   pipeline_mode=pl.Buffered(1))],
            out_specs=pl.BlockSpec((8, 128), lambda i: (i, 0)))
        out = jax.block_until_ready(f(a, w))
        return bool(jnp.allclose(out, 128.0))
    except Exception:
        return False


def _spec(block_shape, index_map, nbuf=None):
    """BlockSpec with optional custom buffering depth (guarded by probe)."""
    if nbuf is not None and _buffered_ok():
        return pl.BlockSpec(block_shape, index_map,
                            pipeline_mode=pl.Buffered(nbuf))
    return pl.BlockSpec(block_shape, index_map)


# ----------------------------------------------------------------------------
# Tile-size selection
# ----------------------------------------------------------------------------
def _pick_tm(K, P, budget, patch_bufs=2, weight_bufs=2):
    """Largest row tile whose pipelined working set fits the budget."""
    for t in _TM_LADDER:
        need = (patch_bufs * t * K * 2          # bf16 patch stream
                + weight_bufs * K * P * 2       # bf16 resident weight
                + 2 * t * P * 2                 # bf16 output tile (dbl-buffered)
                + 2 * 2 * P * 4)                # per-tile stat outputs
        if need <= budget:
            return t
    return _TM_LADDER[-1]


def _pick_epi_tm(P, budget):
    for t in _TM_LADDER:
        need = 3 * 2 * t * P * 2 + 4 * 2 * P * 4   # 3 bf16 row slabs + f32 vecs
        if need <= budget:
            return t
    return _TM_LADDER[-1]


def _cap_tm_for_grid(tm, m_pad, min_steps=MIN_GRID_STEPS):
    """Shrink tm so the 'parallel' row grid has enough steps (v7x megacore)."""
    while m_pad // tm < min_steps and tm != _TM_LADDER[-1]:
        tm = _TM_LADDER[_TM_LADDER.index(tm) + 1]
    return tm


# ----------------------------------------------------------------------------
# Pallas kernels
# ----------------------------------------------------------------------------
def _conv_stats_kernel(p_ref, w_ref, o_ref, sum_ref, ssq_ref):
    """Conv-as-matmul tile: o = patches @ w_col (bf16 x bf16, f32 acc),
    plus per-tile per-channel sum / sum-of-squares partials (from f32 acc)."""
    o = jnp.dot(p_ref[...], w_ref[...], preferred_element_type=jnp.float32)
    o_ref[...] = o.astype(o_ref.dtype)
    sum_ref[...] = jnp.sum(o, axis=0, keepdims=True)
    ssq_ref[...] = jnp.sum(o * o, axis=0, keepdims=True)


def _bn2_add_relu_kernel(o2_ref, s2_ref, b2_ref, sc_ref, ssc_ref, bsc_ref,
                         out_ref):
    """Fused epilogue: relu( bn2(o2) + affine_sc(sc) ), f32 math, bf16 store."""
    y = o2_ref[...].astype(jnp.float32) * s2_ref[...] + b2_ref[...]
    y = y + sc_ref[...].astype(jnp.float32) * ssc_ref[...] + bsc_ref[...]
    out_ref[...] = jnp.maximum(y, 0.0).astype(out_ref.dtype)


# ----------------------------------------------------------------------------
# pallas_call wrappers
# ----------------------------------------------------------------------------
def conv_matmul_stats(patches, w_col):
    """patches [M_pad, K] bf16, w_col [K, P] bf16 (K % 128 == P % 128 == 0).
    Returns (o [M_pad, P] bf16, sums [g,1,P] f32, ssqs [g,1,P] f32)."""
    M_pad, K = patches.shape
    P = w_col.shape[1]
    budget, vlimit, deep = _vmem_config()
    buffered = _buffered_ok()
    w_bufs = 1 if buffered else 2
    p_bufs = 3 if (deep and buffered) else 2
    tm = _pick_tm(K, P, budget, patch_bufs=p_bufs, weight_bufs=w_bufs)
    tm = _cap_tm_for_grid(tm, M_pad)
    grid = M_pad // tm
    return pl.pallas_call(
        _conv_stats_kernel,
        out_shape=(jax.ShapeDtypeStruct((M_pad, P), jnp.bfloat16),
                   jax.ShapeDtypeStruct((grid, 1, P), jnp.float32),
                   jax.ShapeDtypeStruct((grid, 1, P), jnp.float32)),
        grid_spec=pltpu.PrefetchScalarGridSpec(
            num_scalar_prefetch=0,
            grid=(grid,),
            in_specs=[_spec((tm, K), lambda i: (i, 0),
                            nbuf=(3 if p_bufs == 3 else None)),
                      _spec((K, P), lambda i: (0, 0), nbuf=1)],
            out_specs=[pl.BlockSpec((tm, P), lambda i: (i, 0)),
                       pl.BlockSpec((None, 1, P), lambda i: (i, 0, 0)),
                       pl.BlockSpec((None, 1, P), lambda i: (i, 0, 0))]),
        compiler_params=pltpu.CompilerParams(
            dimension_semantics=("parallel",),
            vmem_limit_bytes=vlimit),
    )(patches, w_col)


def bn2_add_relu(o2, scale2, shift2, sc, scale_sc, shift_sc):
    """relu( o2*scale2+shift2 + sc*scale_sc+shift_sc ); o2 (bf16) aliased."""
    M_pad, P = o2.shape
    budget, vlimit, _ = _vmem_config()
    tm = _cap_tm_for_grid(_pick_epi_tm(P, budget), M_pad)
    grid = M_pad // tm
    row = pl.BlockSpec((tm, P), lambda i: (i, 0))
    vec = _spec((1, P), lambda i: (0, 0), nbuf=1)
    return pl.pallas_call(
        _bn2_add_relu_kernel,
        out_shape=jax.ShapeDtypeStruct((M_pad, P), jnp.bfloat16),
        grid_spec=pltpu.PrefetchScalarGridSpec(
            num_scalar_prefetch=0,
            grid=(grid,),
            in_specs=[row, vec, vec, row, vec, vec],
            out_specs=row),
        input_output_aliases={0: 0},
        compiler_params=pltpu.CompilerParams(
            dimension_semantics=("parallel",),
            vmem_limit_bytes=vlimit),
    )(o2, scale2, shift2, sc, scale_sc, shift_sc)


# ----------------------------------------------------------------------------
# Plain-JAX glue (layout plumbing + tiny per-channel folds)
# ----------------------------------------------------------------------------
def im2col(x_nhwc, ksize, stride, pad, out_dtype=jnp.bfloat16):
    """x_nhwc [N,H,W,C] -> patches [N*Ho*Wo, ksize*ksize*C], (kh,kw,c) order."""
    N, H, W, C = x_nhwc.shape
    xp = jnp.pad(x_nhwc, ((0, 0), (pad, pad), (pad, pad), (0, 0)))
    Ho = (H + 2 * pad - ksize) // stride + 1
    Wo = (W + 2 * pad - ksize) // stride + 1
    taps = []
    for kh in range(ksize):
        for kw in range(ksize):
            taps.append(xp[:, kh:kh + stride * Ho:stride,
                           kw:kw + stride * Wo:stride, :])
    p = jnp.stack(taps, axis=3)                      # [N,Ho,Wo,k*k,C]
    return p.reshape(N * Ho * Wo, ksize * ksize * C).astype(out_dtype), Ho, Wo


def w_to_col(w_oihw):
    """PyTorch (O,I,kh,kw) conv weight -> matmul weight [(kh,kw,I), O]."""
    O, I, kh, kw = w_oihw.shape
    return jnp.transpose(w_oihw, (2, 3, 1, 0)).reshape(kh * kw * I, O)


def _pad_rows(a, m_pad):
    return jnp.pad(a, ((0, m_pad - a.shape[0]), (0, 0)))


def _pad_cols(a, p_pad):
    return jnp.pad(a, ((0, 0), (0, p_pad - a.shape[1])))


def bn_fold(sums, ssqs, count, gamma, beta, p_pad):
    """Training-mode BN: batch mean + biased var -> per-channel affine (1,P).

    NOTE: var = E[x^2] - mean^2 in f32 with a clamp >= 0; fine for roughly
    zero-mean conv activations (the ResNet case), but validate at production
    sizes if activations carry a large DC component."""
    s = sums.sum(axis=(0, 1))
    q = ssqs.sum(axis=(0, 1))
    mean = s / count
    var = jnp.maximum(q / count - mean * mean, 0.0)
    g = jnp.pad(gamma, (0, p_pad - gamma.shape[0]))
    b = jnp.pad(beta, (0, p_pad - beta.shape[0]))
    scale = g * jax.lax.rsqrt(var + BN_EPS)
    shift = b - mean * scale
    return scale.reshape(1, -1), shift.reshape(1, -1)


# ----------------------------------------------------------------------------
# BasicBlock forward
# ----------------------------------------------------------------------------
def basic_block_forward(x_nchw, params, stride):
    # Warm the cached hardware / feature probes OUTSIDE jit tracing.
    _vmem_config()
    _buffered_ok()
    return _basic_block_forward(x_nchw, params, stride)


@functools.partial(jax.jit, static_argnames=("stride",))
def _basic_block_forward(x_nchw, params, stride):
    N, C, H, W = x_nchw.shape
    planes = params["w1"].shape[0]
    P_pad = _round_up(planes, 128)                    # lane-dense output slabs
    x = jnp.transpose(x_nchw, (0, 2, 3, 1)).astype(jnp.float32)   # NHWC

    # conv1 (3x3, stride, pad=1) + batch stats
    p1, Ho, Wo = im2col(x, 3, stride, 1)
    M = N * Ho * Wo
    M_pad = _round_up(M, ROW_ALIGN)
    K1_pad = _round_up(p1.shape[1], 128)
    p1 = _pad_rows(_pad_cols(p1, K1_pad), M_pad)
    w1 = _pad_rows(_pad_cols(w_to_col(params["w1"]), P_pad),
                   K1_pad).astype(jnp.bfloat16)
    o1, s1, q1 = conv_matmul_stats(p1, w1)
    scale1, shift1 = bn_fold(s1, q1, M, params["g1"], params["b1"], P_pad)

    # bn1 + relu fused into the bf16 producer of conv2's im2col patches
    o1n = jnp.maximum(
        o1[:M, :planes].astype(jnp.float32) * scale1[:, :planes]
        + shift1[:, :planes], 0.0).astype(jnp.bfloat16)
    p2, _, _ = im2col(o1n.reshape(N, Ho, Wo, planes), 3, 1, 1)
    K2_pad = _round_up(p2.shape[1], 128)
    p2 = _pad_rows(_pad_cols(p2, K2_pad), M_pad)
    w2 = _pad_rows(_pad_cols(w_to_col(params["w2"]), P_pad),
                   K2_pad).astype(jnp.bfloat16)
    o2, s2, q2 = conv_matmul_stats(p2, w2)
    scale2, shift2 = bn_fold(s2, q2, M, params["g2"], params["b2"], P_pad)

    # shortcut: identity for stride==1, else 1x1 strided conv (+ BN fold,
    # applied inside the fused epilogue kernel)
    if stride != 1:
        C_pad = _round_up(C, 128)
        xs = x[:, ::stride, ::stride, :].reshape(M, C).astype(jnp.bfloat16)
        xs = _pad_rows(_pad_cols(xs, C_pad), M_pad)
        wsc = jnp.transpose(params["wsc"][:, :, 0, 0], (1, 0))    # [C, planes]
        wsc = _pad_rows(_pad_cols(wsc, P_pad), C_pad).astype(jnp.bfloat16)
        sc, ss, sq = conv_matmul_stats(xs, wsc)
        scale_sc, shift_sc = bn_fold(ss, sq, M, params["gsc"], params["bsc"],
                                     P_pad)
    else:
        # PyTorch module only adds identity here (assumes in_planes == planes)
        assert C == planes, "identity shortcut requires in_planes == planes"
        sc = _pad_rows(_pad_cols(x.reshape(M, C).astype(jnp.bfloat16), P_pad),
                       M_pad)
        scale_sc = jnp.ones((1, P_pad), jnp.float32)
        shift_sc = jnp.zeros((1, P_pad), jnp.float32)

    out = bn2_add_relu(o2, scale2, shift2, sc, scale_sc, shift_sc)
    out = out[:M, :planes].astype(jnp.float32).reshape(N, Ho, Wo, planes)
    return jnp.transpose(out, (0, 3, 1, 2))


# ----------------------------------------------------------------------------
# Pure-JAX reference (for correctness check)
# ----------------------------------------------------------------------------
def ref_basic_block(x, params, stride):
    def conv(x, w, s, pad):
        return jax.lax.conv_general_dilated(
            x, w, (s, s), [(pad, pad), (pad, pad)],
            dimension_numbers=("NCHW", "OIHW", "NCHW"))

    def bn(x, g, b):
        mean = x.mean(axis=(0, 2, 3), keepdims=True)
        var = x.var(axis=(0, 2, 3), keepdims=True)   # biased, like torch training
        xn = (x - mean) / jnp.sqrt(var + BN_EPS)
        return g.reshape(1, -1, 1, 1) * xn + b.reshape(1, -1, 1, 1)

    out = jax.nn.relu(bn(conv(x, params["w1"], stride, 1),
                         params["g1"], params["b1"]))
    out = bn(conv(out, params["w2"], 1, 1), params["g2"], params["b2"])
    if stride != 1:
        sc = bn(conv(x, params["wsc"], stride, 0), params["gsc"], params["bsc"])
    else:
        sc = x
    return jax.nn.relu(out + sc)


# ----------------------------------------------------------------------------
# Deterministic parameter init + driver
# ----------------------------------------------------------------------------
def make_params(key, in_planes, planes, stride):
    ks = jax.random.split(key, 9)
    params = {
        "w1": 0.1 * jax.random.normal(ks[0], (planes, in_planes, 3, 3), jnp.float32),
        "g1": 1.0 + 0.1 * jax.random.normal(ks[1], (planes,), jnp.float32),
        "b1": 0.1 * jax.random.normal(ks[2], (planes,), jnp.float32),
        "w2": 0.1 * jax.random.normal(ks[3], (planes, planes, 3, 3), jnp.float32),
        "g2": 1.0 + 0.1 * jax.random.normal(ks[4], (planes,), jnp.float32),
        "b2": 0.1 * jax.random.normal(ks[5], (planes,), jnp.float32),
    }
    if stride != 1:
        params["wsc"] = 0.1 * jax.random.normal(ks[6], (planes, in_planes, 1, 1), jnp.float32)
        params["gsc"] = 1.0 + 0.1 * jax.random.normal(ks[7], (planes,), jnp.float32)
        params["bsc"] = 0.1 * jax.random.normal(ks[8], (planes,), jnp.float32)
    return params


if __name__ == "__main__":
    key = jax.random.PRNGKey(0)

    # Case 1: stride=1 identity shortcut (in_planes == planes)
    k_x1, k_p1, k_x2, k_p2 = jax.random.split(key, 4)
    x1 = jax.random.normal(k_x1, (2, 8, 16, 16), jnp.float32)
    params1 = make_params(k_p1, in_planes=8, planes=8, stride=1)
    out1 = jax.block_until_ready(basic_block_forward(x1, params1, stride=1))
    ref1 = ref_basic_block(x1, params1, stride=1)
    assert out1.shape == (2, 8, 16, 16)
    # bf16 MXU operands + bf16 stored activations -> loose tolerance
    assert jnp.allclose(out1, ref1, atol=4e-2, rtol=3e-2), "stride=1 mismatch"

    # Case 2: stride=2 downsampling shortcut (1x1 conv + bn)
    x2 = jax.random.normal(k_x2, (2, 8, 16, 16), jnp.float32)
    params2 = make_params(k_p2, in_planes=8, planes=16, stride=2)
    out2 = jax.block_until_ready(basic_block_forward(x2, params2, stride=2))
    ref2 = ref_basic_block(x2, params2, stride=2)
    assert out2.shape == (2, 16, 8, 8)
    assert jnp.allclose(out2, ref2, atol=4e-2, rtol=3e-2), "stride=2 mismatch"

    print("KERNEL_OK")
</pallas_src>

<mosaic_0001>
module attributes {stable_mosaic.version = 11 : i64} {
  func.func @_conv_stats_kernel(%arg0: i32, %arg1: memref<128x128xbf16, #tpu.memory_space<vmem>>, %arg2: memref<128x128xbf16, #tpu.memory_space<vmem>>, %arg3: memref<128x128xbf16, #tpu.memory_space<vmem>>, %arg4: memref<1x1x128xf32, #tpu.memory_space<vmem>>, %arg5: memref<1x1x128xf32, #tpu.memory_space<vmem>>) attributes {dimension_semantics = [#tpu.dimension_semantics<parallel>], iteration_bounds = array<i64: 4>, scalar_prefetch = 0 : i64, scratch_operands = 0 : i64, tpu.core_type = #tpu.core_type<tc>, window_params = [{transform_indices = @transform_0, window_bounds = array<i64: 128, 128>}, {pipeline_mode = #tpu.pipeline_mode<synchronous>, transform_indices = @transform_1, window_bounds = array<i64: 128, 128>}, {transform_indices = @transform_2, window_bounds = array<i64: 128, 128>}, {transform_indices = @transform_3, window_bounds = array<i64: 1, 1, 128>}, {transform_indices = @transform_4, window_bounds = array<i64: 1, 1, 128>}]} {
    %c0 = arith.constant 0 : index
    %c0_0 = arith.constant 0 : index
    %0 = vector.load %arg1[%c0, %c0_0] : memref<128x128xbf16, #tpu.memory_space<vmem>>, vector<128x128xbf16>
    %c0_1 = arith.constant 0 : index
    %c0_2 = arith.constant 0 : index
    %1 = vector.load %arg2[%c0_1, %c0_2] : memref<128x128xbf16, #tpu.memory_space<vmem>>, vector<128x128xbf16>
    %cst = arith.constant dense<0.000000e+00> : vector<128x128xf32>
    %2 = tpu.matmul %0, %1, %cst {dimension_numbers = #tpu.dot_dimension_numbers<[1], [0], [0], [1], [0, 0, 1, 1], [], []>} : vector<128x128xbf16>, vector<128x128xbf16>, vector<128x128xf32> -> vector<128x128xf32>
    %3 = arith.truncf %2 : vector<128x128xf32> to vector<128x128xbf16>
    %c0_3 = arith.constant 0 : index
    %c0_4 = arith.constant 0 : index
    %4 = vector.load %arg3[%c0_3, %c0_4] : memref<128x128xbf16, #tpu.memory_space<vmem>>, vector<128x128xbf16>
    tpu.vector_store %arg3[%c0_3, %c0_4], %3 {strides = array<i32>} : memref<128x128xbf16, #tpu.memory_space<vmem>>, vector<128x128xbf16>,
    %cst_5 = arith.constant dense<0.000000e+00> : vector<128xf32>
    %5 = vector.multi_reduction <add>, %2, %cst_5 [0] : vector<128x128xf32> to vector<128xf32>
    %6 = vector.shape_cast %5 : vector<128xf32> to vector<1x128xf32>
    %c0_6 = arith.constant 0 : index
    %c0_7 = arith.constant 0 : index
    %c0_8 = arith.constant 0 : index
    %7 = vector.load %arg4[%c0_6, %c0_7, %c0_8] : memref<1x1x128xf32, #tpu.memory_space<vmem>>, vector<1x1x128xf32>
    %8 = vector.shape_cast %7 : vector<1x1x128xf32> to vector<1x128xf32>
    %9 = vector.shape_cast %6 : vector<1x128xf32> to vector<1x1x128xf32>
    tpu.vector_store %arg4[%c0_6, %c0_7, %c0_8], %9 {strides = array<i32>} : memref<1x1x128xf32, #tpu.memory_space<vmem>>, vector<1x1x128xf32>,
    %10 = arith.mulf %2, %2 : vector<128x128xf32>
    %cst_9 = arith.constant dense<0.000000e+00> : vector<128xf32>
    %11 = vector.multi_reduction <add>, %10, %cst_9 [0] : vector<128x128xf32> to vector<128xf32>
    %12 = vector.shape_cast %11 : vector<128xf32> to vector<1x128xf32>
    %c0_10 = arith.constant 0 : index
    %c0_11 = arith.constant 0 : index
    %c0_12 = arith.constant 0 : index
    %13 = vector.load %arg5[%c0_10, %c0_11, %c0_12] : memref<1x1x128xf32, #tpu.memory_space<vmem>>, vector<1x1x128xf32>
    %14 = vector.shape_cast %13 : vector<1x1x128xf32> to vector<1x128xf32>
    %15 = vector.shape_cast %12 : vector<1x128xf32> to vector<1x1x128xf32>
    tpu.vector_store %arg5[%c0_10, %c0_11, %c0_12], %15 {strides = array<i32>} : memref<1x1x128xf32, #tpu.memory_space<vmem>>, vector<1x1x128xf32>,
    return
  }
  func.func @transform_0(%arg0: i32) -> (i32, i32) {
    %c0_i32 = arith.constant 0 : i32
    %c0_i32_0 = arith.constant 0 : i32
    return %arg0, %c0_i32 : i32, i32
  }
  func.func @transform_1(%arg0: i32) -> (i32, i32) {
    %c0_i32 = arith.constant 0 : i32
    %c0_i32_0 = arith.constant 0 : i32
    %c0_i32_1 = arith.constant 0 : i32
    return %c0_i32, %c0_i32_0 : i32, i32
  }
  func.func @transform_2(%arg0: i32) -> (i32, i32) {
    %c0_i32 = arith.constant 0 : i32
    %c0_i32_0 = arith.constant 0 : i32
    return %arg0, %c0_i32 : i32, i32
  }
  func.func @transform_3(%arg0: i32) -> (i32, i32, i32) {
    %c0_i32 = arith.constant 0 : i32
    %c0_i32_0 = arith.constant 0 : i32
    %c0_i32_1 = arith.constant 0 : i32
    return %arg0, %c0_i32, %c0_i32_0 : i32, i32, i32
  }
  func.func @transform_4(%arg0: i32) -> (i32, i32, i32) {
    %c0_i32 = arith.constant 0 : i32
    %c0_i32_0 = arith.constant 0 : i32
    %c0_i32_1 = arith.constant 0 : i32
    return %arg0, %c0_i32, %c0_i32_0 : i32, i32, i32
  }
}

module attributes {stable_mosaic.version = 11 : i64} {
  func.func @_bn2_add_relu_kernel(%arg0: i32, %arg1: memref<128x128xbf16, #tpu.memory_space<vmem>>, %arg2: memref<1x128xf32, #tpu.memory_space<vmem>>, %arg3: memref<1x128xf32, #tpu.memory_space<vmem>>, %arg4: memref<128x128xbf16, #tpu.memory_space<vmem>>, %arg5: memref<1x128xf32, #tpu.memory_space<vmem>>, %arg6: memref<1x128xf32, #tpu.memory_space<vmem>>, %arg7: memref<128x128xbf16, #tpu.memory_space<vmem>>) attributes {dimension_semantics = [#tpu.dimension_semantics<parallel>], iteration_bounds = array<i64: 4>, scalar_prefetch = 0 : i64, scratch_operands = 0 : i64, tpu.core_type = #tpu.core_type<tc>, window_params = [{transform_indices = @transform_0, window_bounds = array<i64: 128, 128>}, {pipeline_mode = #tpu.pipeline_mode<synchronous>, transform_indices = @transform_1, window_bounds = array<i64: 1, 128>}, {pipeline_mode = #tpu.pipeline_mode<synchronous>, transform_indices = @transform_2, window_bounds = array<i64: 1, 128>}, {transform_indices = @transform_3, window_bounds = array<i64: 128, 128>}, {pipeline_mode = #tpu.pipeline_mode<synchronous>, transform_indices = @transform_4, window_bounds = array<i64: 1, 128>}, {pipeline_mode = #tpu.pipeline_mode<synchronous>, transform_indices = @transform_5, window_bounds = array<i64: 1, 128>}, {transform_indices = @transform_6, window_bounds = array<i64: 128, 128>}]} {
    %c0 = arith.constant 0 : index
    %c0_0 = arith.constant 0 : index
    %0 = vector.load %arg1[%c0, %c0_0] : memref<128x128xbf16, #tpu.memory_space<vmem>>, vector<128x128xbf16>
    %1 = arith.extf %0 : vector<128x128xbf16> to vector<128x128xf32>
    %c0_1 = arith.constant 0 : index
    %c0_2 = arith.constant 0 : index
    %2 = vector.load %arg2[%c0_1, %c0_2] : memref<1x128xf32, #tpu.memory_space<vmem>>, vector<1x128xf32>
    %3 = vector.broadcast %2 : vector<1x128xf32> to vector<128x128xf32>
    %4 = arith.mulf %1, %3 : vector<128x128xf32>
    %c0_3 = arith.constant 0 : index
    %c0_4 = arith.constant 0 : index
    %5 = vector.load %arg3[%c0_3, %c0_4] : memref<1x128xf32, #tpu.memory_space<vmem>>, vector<1x128xf32>
    %6 = vector.broadcast %5 : vector<1x128xf32> to vector<128x128xf32>
    %7 = arith.addf %4, %6 : vector<128x128xf32>
    %c0_5 = arith.constant 0 : index
    %c0_6 = arith.constant 0 : index
    %8 = vector.load %arg4[%c0_5, %c0_6] : memref<128x128xbf16, #tpu.memory_space<vmem>>, vector<128x128xbf16>
    %9 = arith.extf %8 : vector<128x128xbf16> to vector<128x128xf32>
    %c0_7 = arith.constant 0 : index
    %c0_8 = arith.constant 0 : index
    %10 = vector.load %arg5[%c0_7, %c0_8] : memref<1x128xf32, #tpu.memory_space<vmem>>, vector<1x128xf32>
    %11 = vector.broadcast %10 : vector<1x128xf32> to vector<128x128xf32>
    %12 = arith.mulf %9, %11 : vector<128x128xf32>
    %13 = arith.addf %7, %12 : vector<128x128xf32>
    %c0_9 = arith.constant 0 : index
    %c0_10 = arith.constant 0 : index
    %14 = vector.load %arg6[%c0_9, %c0_10] : memref<1x128xf32, #tpu.memory_space<vmem>>, vector<1x128xf32>
    %15 = vector.broadcast %14 : vector<1x128xf32> to vector<128x128xf32>
    %16 = arith.addf %13, %15 : vector<128x128xf32>
    %cst = arith.constant 0.000000e+00 : f32
    %17 = vector.broadcast %cst : f32 to vector<128x128xf32>
    %18 = arith.maximumf %16, %17 : vector<128x128xf32>
    %19 = arith.truncf %18 : vector<128x128xf32> to vector<128x128xbf16>
    %c0_11 = arith.constant 0 : index
    %c0_12 = arith.constant 0 : index
    %20 = vector.load %arg7[%c0_11, %c0_12] : memref<128x128xbf16, #tpu.memory_space<vmem>>, vector<128x128xbf16>
    tpu.vector_store %arg7[%c0_11, %c0_12], %19 {strides = array<i32>} : memref<128x128xbf16, #tpu.memory_space<vmem>>, vector<128x128xbf16>,
    return
  }
  func.func @transform_0(%arg0: i32) -> (i32, i32) {
    %c0_i32 = arith.constant 0 : i32
    %c0_i32_0 = arith.constant 0 : i32
    return %arg0, %c0_i32 : i32, i32
  }
  func.func @transform_1(%arg0: i32) -> (i32, i32) {
    %c0_i32 = arith.constant 0 : i32
    %c0_i32_0 = arith.constant 0 : i32
    %c0_i32_1 = arith.constant 0 : i32
    return %c0_i32, %c0_i32_0 : i32, i32
  }
  func.func @transform_2(%arg0: i32) -> (i32, i32) {
    %c0_i32 = arith.constant 0 : i32
    %c0_i32_0 = arith.constant 0 : i32
    %c0_i32_1 = arith.constant 0 : i32
    return %c0_i32, %c0_i32_0 : i32, i32
  }
  func.func @transform_3(%arg0: i32) -> (i32, i32) {
    %c0_i32 = arith.constant 0 : i32
    %c0_i32_0 = arith.constant 0 : i32
    return %arg0, %c0_i32 : i32, i32
  }
  func.func @transform_4(%arg0: i32) -> (i32, i32) {
    %c0_i32 = arith.constant 0 : i32
    %c0_i32_0 = arith.constant 0 : i32
    %c0_i32_1 = arith.constant 0 : i32
    return %c0_i32, %c0_i32_0 : i32, i32
  }
  func.func @transform_5(%arg0: i32) -> (i32, i32) {
    %c0_i32 = arith.constant 0 : i32
    %c0_i32_0 = arith.constant 0 : i32
    %c0_i32_1 = arith.constant 0 : i32
    return %c0_i32, %c0_i32_0 : i32, i32
  }
  func.func @transform_6(%arg0: i32) -> (i32, i32) {
    %c0_i32 = arith.constant 0 : i32
    %c0_i32_0 = arith.constant 0 : i32
    return %arg0, %c0_i32 : i32, i32
  }
}

</mosaic_0001>

<llo_original>
// kernel: _basic_block_forward.3
$region0: #{_basic_block_forward.3}
  #allocation0 [shape = 'u32[]', space=smem, size = 0x4, offset = 0x4, fixed_abs, tag = 'smem constant byte address 0x4 - core index']
  #allocation1 [shape = 'u32[144,128]{1,0:T(1,128)}', space=vmem, size = 0x12000, scoped, tag = 'internal scratch']
  %s0 = inlined_call_operand.vmem [shape: bf16[512,128], index: 0, kind: input, shape index: {}]
  %s1 = inlined_call_operand.vmem [shape: bf16[128,128], index: 1, kind: input, shape index: {}]
  %s2 = inlined_call_operand.vmem [shape: bf16[512,128], index: 2, kind: output, shape index: {0}]
  %s3 = inlined_call_operand.vmem [shape: f32[4,1,128], index: 3, kind: output, shape index: {1}]
  %s4 = inlined_call_operand.vmem [shape: f32[4,1,128], index: 4, kind: output, shape index: {2}]
  %5 = xla_tuple %s2, %s3, %s4
  %s6 = sld [smem:[#allocation0]]
  $region57: #{_basic_block_forward.3} parent=0
    _
  %s8 = ssub.s32 1, %s6
  %s9 = scalar_select 0, %s8, %s6
  loop: start=0, step=1, limit=6
  $region2: #{_basic_block_forward.3} parent=0 // loop_pre_header
    _
  $region3: #{_basic_block_forward.3} parent=0 // loop_header
    %s11 = sphi 0, %s15
    %p12 = scmp.ge.s32.totalorder %s11, 6
    %s21 = sphi 0, %s23
    %s24 = sphi 0, %s21
    %s25 = sphi 0, %s24
    %s41 = sphi 0, %s25
    %s45 = sphi 0, %s45
    %s47 = sphi 0, %s45
    %s48 = sphi 0, %s47
    %s62 = sphi 0, %s48
    %s68 = sphi 0, %s70
    %s71 = sphi 0, %s68
    %s72 = sphi 0, %s71
    %s88 = sphi 0, %s72
    %s94 = sphi 0, %s96
    %s97 = sphi 0, %s94
    %s98 = sphi 0, %s97
    %s114 = sphi 0, %s98
    %s120 = sphi 0, %s122
    %s123 = sphi 0, %s120
    %s124 = sphi 0, %s123
    %s140 = sphi 0, %s124
  $region4: #{_basic_block_forward.3} parent=0 // loop_header_branch
    %14 = sbr.rel (%p12) target = $region8
  $region5: #{_basic_block_forward.3} parent=0 // loop_body
    %s16 = ssub.s32 %s11, 1
    %s17 = ssub.s32 %s11, 2
    %s18 = sadd.s32 %s11, 1
    %s19 = ssub.s32 %s11, %s18
    %p20 = scmp.eq.s32.totalorder %s19, 0
    %s22 = sadd.s32 %s21, 1
    %s23 = scalar_select %p20, %s21, %s22
    %p26 = pneg %p20
    %p27 = scmp.eq.s32.totalorder %s11, 3
    %p28 = por %p26, %p27
    %p29 = scmp.ne.s32.totalorder %s21, %s24
    %p30 = scmp.eq.s32.totalorder %s11, 0
    %p31 = por %p29, %p30
    %p32 = scmp.ne.s32.totalorder %s21, %s24
    %p33 = scmp.eq.s32.totalorder %s16, 3
    %p34 = por %p32, %p33
    %p35 = scmp.ne.s32.totalorder %s24, %s25
    %p36 = scmp.eq.s32.totalorder %s16, 0
    %p37 = por %p35, %p36
    %p38 = scmp.ne.s32.totalorder %s24, %s25
    %p39 = scmp.eq.s32.totalorder %s17, 3
    %p40 = por %p38, %p39
    %p42 = scmp.ne.s32.totalorder %s25, %s41
    %p43 = scmp.eq.s32.totalorder %s17, 0
    %p44 = por %p42, %p43
    %s46 = sadd.s32 %s45, 1
    %p49 = scmp.eq.s32.totalorder %s11, 3
    %p50 = scmp.ne.s32.totalorder %s45, %s47
    %p51 = scmp.eq.s32.totalorder %s11, 0
    %p52 = por %p50, %p51
    %p53 = scmp.ne.s32.totalorder %s45, %s47
    %p54 = scmp.eq.s32.totalorder %s16, 3
    %p55 = por %p53, %p54
    %p56 = scmp.ne.s32.totalorder %s47, %s48
    %p57 = scmp.eq.s32.totalorder %s16, 0
    %p58 = por %p56, %p57
    %p59 = scmp.ne.s32.totalorder %s47, %s48
    %p60 = scmp.eq.s32.totalorder %s17, 3
    %p61 = por %p59, %p60
    %p63 = scmp.ne.s32.totalorder %s48, %s62
    %p64 = scmp.eq.s32.totalorder %s17, 0
    %p65 = por %p63, %p64
    %s66 = ssub.s32 %s11, %s18
    %p67 = scmp.eq.s32.totalorder %s66, 0
    %s69 = sadd.s32 %s68, 1
    %s70 = scalar_select %p67, %s68, %s69
    %p73 = pneg %p67
    %p74 = scmp.eq.s32.totalorder %s11, 3
    %p75 = por %p73, %p74
    %p76 = scmp.ne.s32.totalorder %s68, %s71
    %p77 = scmp.eq.s32.totalorder %s11, 0
    %p78 = por %p76, %p77
    %p79 = scmp.ne.s32.totalorder %s68, %s71
    %p80 = scmp.eq.s32.totalorder %s16, 3
    %p81 = por %p79, %p80
    %p82 = scmp.ne.s32.totalorder %s71, %s72
    %p83 = scmp.eq.s32.totalorder %s16, 0
    %p84 = por %p82, %p83
    %p85 = scmp.ne.s32.totalorder %s71, %s72
    %p86 = scmp.eq.s32.totalorder %s17, 3
    %p87 = por %p85, %p86
    %p89 = scmp.ne.s32.totalorder %s72, %s88
    %p90 = scmp.eq.s32.totalorder %s17, 0
    %p91 = por %p89, %p90
    %s92 = ssub.s32 %s11, %s18
    %p93 = scmp.eq.s32.totalorder %s92, 0
    %s95 = sadd.s32 %s94, 1
    %s96 = scalar_select %p93, %s94, %s95
    %p99 = pneg %p93
    %p100 = scmp.eq.s32.totalorder %s11, 3
    %p101 = por %p99, %p100
    %p102 = scmp.ne.s32.totalorder %s94, %s97
    %p103 = scmp.eq.s32.totalorder %s11, 0
    %p104 = por %p102, %p103
    %p105 = scmp.ne.s32.totalorder %s94, %s97
    %p106 = scmp.eq.s32.totalorder %s16, 3
    %p107 = por %p105, %p106
    %p108 = scmp.ne.s32.totalorder %s97, %s98
    %p109 = scmp.eq.s32.totalorder %s16, 0
    %p110 = por %p108, %p109
    %p111 = scmp.ne.s32.totalorder %s97, %s98
    %p112 = scmp.eq.s32.totalorder %s17, 3
    %p113 = por %p111, %p112
    %p115 = scmp.ne.s32.totalorder %s98, %s114
    %p116 = scmp.eq.s32.totalorder %s17, 0
    %p117 = por %p115, %p116
    %s118 = ssub.s32 %s11, %s18
    %p119 = scmp.eq.s32.totalorder %s118, 0
    %s121 = sadd.s32 %s120, 1
    %s122 = scalar_select %p119, %s120, %s121
    %p125 = pneg %p119
    %p126 = scmp.eq.s32.totalorder %s11, 3
    %p127 = por %p125, %p126
    %p128 = scmp.ne.s32.totalorder %s120, %s123
    %p129 = scmp.eq.s32.totalorder %s11, 0
    %p130 = por %p128, %p129
    %p131 = scmp.ne.s32.totalorder %s120, %s123
    %p132 = scmp.eq.s32.totalorder %s16, 3
    %p133 = por %p131, %p132
    %p134 = scmp.ne.s32.totalorder %s123, %s124
    %p135 = scmp.eq.s32.totalorder %s16, 0
    %p136 = por %p134, %p135
    %p137 = scmp.ne.s32.totalorder %s123, %s124
    %p138 = scmp.eq.s32.totalorder %s17, 3
    %p139 = por %p137, %p138
    %p141 = scmp.ne.s32.totalorder %s124, %s140
    %p142 = scmp.eq.s32.totalorder %s17, 0
    %p143 = por %p141, %p142
    %p144 = scmp.le.s32.totalorder 1, %s11
    %p145 = scmp.lt.s32.totalorder %s11, 5
    %p146 = pnand %p144, %p145
    %p147 = pneg %p146
    // Predicated region
    $region9: #{_basic_block_forward.3} parent=5 // pred_check
      _
    $region10: #{_basic_block_forward.3} parent=5 // pred_check_branch
      %149 = sbr.rel (%p146) target = $region12
    $region11: #{_basic_block_forward.3} parent=5 // pred_region
      %s150 = ssub.s32 %s11, 1
      // Predicated region
      $region13: #{_basic_block_forward.3} parent=11 // pred_check
        %p151 = pneg %p58
      $region14: #{_basic_block_forward.3} parent=11 // pred_check_branch
        %153 = sbr.rel (%p151) target = $region16
      $region15: #{_basic_block_forward.3} parent=11 // pred_region
        _
      $region16: #{_basic_block_forward.3} parent=11 // pred_fallthru
        _
    $region12: #{_basic_block_forward.3} parent=5 // pred_fallthru
      _
    %p154 = scmp.lt.s32.totalorder %s11, 4
    // Predicated region
    $region17: #{_basic_block_forward.3} parent=5 // pred_check
      %p155 = pneg %p154
    $region18: #{_basic_block_forward.3} parent=5 // pred_check_branch
      %157 = sbr.rel (%p155) target = $region20
    $region19: #{_basic_block_forward.3} parent=5 // pred_region
      // Predicated region
      $region21: #{_basic_block_forward.3} parent=19 // pred_check
        %p158 = pneg %p31
      $region22: #{_basic_block_forward.3} parent=19 // pred_check_branch
        %160 = sbr.rel (%p158) target = $region24
      $region23: #{_basic_block_forward.3} parent=19 // pred_region
        %s161 = smul.u32 16, %s11
        %p162 = scmp.lt.s32.totalorder %s161, 63
        %s163 = scalar_select %p162, %s161, 63
        %s164 = smul.addr %s163, 4
        %s165 = scalar_lea.vmem %s0, %s164
        %s166 = smul.u32 16, %s11
      $region24: #{_basic_block_forward.3} parent=19 // pred_fallthru
        _
    $region20: #{_basic_block_forward.3} parent=5 // pred_fallthru
      _
    %p167 = scmp.le.s32.totalorder 1, %s11
    %p168 = scmp.lt.s32.totalorder %s11, 5
    %p169 = pnand %p167, %p168
    %p170 = pneg %p169
    // Predicated region
    $region25: #{_basic_block_forward.3} parent=5 // pred_check
      _
    $region26: #{_basic_block_forward.3} parent=5 // pred_check_branch
      %172 = sbr.rel (%p169) target = $region28
    $region27: #{_basic_block_forward.3} parent=5 // pred_region
      %s173 = ssub.s32 %s11, 1
      %s174 = smul.u32 16, %s16
      %p175 = scmp.lt.s32.totalorder %s174, 63
      %s176 = scalar_select %p175, %s174, 63
      %s177 = smul.addr %s176, 4
      %s178 = scalar_lea.vmem %s0, %s177
      %p179 = pneg %p37
      %p180 = pneg %p34
      %p181 = pneg %p58
      %p182 = pneg %p55
      %p183 = pneg %p84
      %p184 = pneg %p81
      %s185 = smul.u32 16, %s16
      %p186 = scmp.lt.s32.totalorder %s185, 63
      %s187 = scalar_select %p186, %s185, 63
      %s188 = smul.addr %s187, 4
      %s189 = scalar_lea.vmem %s2, %s188
      %p190 = pneg %p110
      %p191 = pneg %p107
      %p192 = scmp.lt.s32.totalorder %s16, 3
      %s193 = scalar_select %p192, %s16, 3
      %s194 = scalar_lea.vmem %s3, %s193
      %p195 = pneg %p136
      %p196 = pneg %p133
      %p197 = scmp.lt.s32.totalorder %s16, 3
      %s198 = scalar_select %p197, %s16, 3
      %s199 = scalar_lea.vmem %s4, %s198
      %s200 = smul.u32 16, %s16
      %p201 = scmp.lt.s32.totalorder %s200, 63
      %s202 = scalar_select %p201, %s200, 63
      %s203 = smul.addr %s202, 4
      %s204 = scalar_lea.vmem %s0, %s203
      %s205 = smul.u32 16, %s16
      %s206 = smul.u32 16, %s16
      %p207 = scmp.lt.s32.totalorder %s206, 63
      %s208 = scalar_select %p207, %s206, 63
      %s209 = smul.addr %s208, 4
      %s210 = scalar_lea.vmem %s2, %s209
      %s211 = smul.u32 16, %s16
      %p212 = scmp.lt.s32.totalorder %s16, 3
      %s213 = scalar_select %p212, %s16, 3
      %s214 = scalar_lea.vmem %s3, %s213
      %p215 = scmp.lt.s32.totalorder %s16, 3
      %s216 = scalar_select %p215, %s16, 3
      %s217 = scalar_lea.vmem %s4, %s216
      %v219 = vld [vmem:[%s204] sm:$0xf]
      %v220 = vld [vmem:[%s204 + $0x4] sm:$0xf]
      %v221 = vld [vmem:[%s204 + $0x8] sm:$0xf]
      %v222 = vld [vmem:[%s204 + $0xc] sm:$0xf]
      %v223 = vld [vmem:[%s204 + $0x10] sm:$0xf]
      %v224 = vld [vmem:[%s204 + $0x14] sm:$0xf]
      %v225 = vld [vmem:[%s204 + $0x18] sm:$0xf]
      %v226 = vld [vmem:[%s204 + $0x1c] sm:$0xf]
      %v227 = vld [vmem:[%s204 + $0x20] sm:$0xf]
      %v228 = vld [vmem:[%s204 + $0x24] sm:$0xf]
      %v229 = vld [vmem:[%s204 + $0x28] sm:$0xf]
      %v230 = vld [vmem:[%s204 + $0x2c] sm:$0xf]
      %v231 = vld [vmem:[%s204 + $0x30] sm:$0xf]
      %v232 = vld [vmem:[%s204 + $0x34] sm:$0xf]
      %v233 = vld [vmem:[%s204 + $0x38] sm:$0xf]
      %v234 = vld [vmem:[%s204 + $0x3c] sm:$0xf]
      %v235 = vld [vmem:[%s1] sm:$0xf]
      %v236 = vld [vmem:[%s1 + $0x4] sm:$0xf]
      %v237 = vld [vmem:[%s1 + $0x8] sm:$0xf]
      %v238 = vld [vmem:[%s1 + $0xc] sm:$0xf]
      %v239 = vld [vmem:[%s1 + $0x10] sm:$0xf]
      %v240 = vld [vmem:[%s1 + $0x14] sm:$0xf]
      %v241 = vld [vmem:[%s1 + $0x18] sm:$0xf]
      %v242 = vld [vmem:[%s1 + $0x1c] sm:$0xf]
      %v243 = vld [vmem:[%s1 + $0x20] sm:$0xf]
      %v244 = vld [vmem:[%s1 + $0x24] sm:$0xf]
      %v245 = vld [vmem:[%s1 + $0x28] sm:$0xf]
      %v246 = vld [vmem:[%s1 + $0x2c] sm:$0xf]
      %v247 = vld [vmem:[%s1 + $0x30] sm:$0xf]
      %v248 = vld [vmem:[%s1 + $0x34] sm:$0xf]
      %v249 = vld [vmem:[%s1 + $0x38] sm:$0xf]
      %v250 = vld [vmem:[%s1 + $0x3c] sm:$0xf]
      %v267 = vunpack.c.l.b16 %v219
      %v268 = vunpack.c.l.b16 %v220
      %v269 = vunpack.c.l.b16 %v221
      %v270 = vunpack.c.l.b16 %v222
      %v271 = vunpack.c.l.b16 %v223
      %v272 = vunpack.c.l.b16 %v224
      %v273 = vunpack.c.l.b16 %v225
      %v274 = vunpack.c.l.b16 %v226
      %v275 = vunpack.c.l.b16 %v227
      %v276 = vunpack.c.l.b16 %v228
      %v277 = vunpack.c.l.b16 %v229
      %v278 = vunpack.c.l.b16 %v230
      %v279 = vunpack.c.l.b16 %v231
      %v280 = vunpack.c.l.b16 %v232
      %v281 = vunpack.c.l.b16 %v233
      %v282 = vunpack.c.l.b16 %v234
      %v283 = vpack.c.b16 %v268, %v267
      %v284 = vpack.c.b16 %v270, %v269
      %v285 = vpack.c.b16 %v272, %v271
      %v286 = vpack.c.b16 %v274, %v273
      %v287 = vpack.c.b16 %v276, %v275
      %v288 = vpack.c.b16 %v278, %v277
      %v289 = vpack.c.b16 %v280, %v279
      %v290 = vpack.c.b16 %v282, %v281
      %v315 = vunpack.c.l.b16 %v235
      %v316 = vunpack.c.l.b16 %v236
      %v317 = vunpack.c.l.b16 %v237
      %v318 = vunpack.c.l.b16 %v238
      %v319 = vunpack.c.l.b16 %v239
      %v320 = vunpack.c.l.b16 %v240
      %v321 = vunpack.c.l.b16 %v241
      %v322 = vunpack.c.l.b16 %v242
      %v323 = vunpack.c.l.b16 %v243
      %v324 = vunpack.c.l.b16 %v244
      %v325 = vunpack.c.l.b16 %v245
      %v326 = vunpack.c.l.b16 %v246
      %v327 = vunpack.c.l.b16 %v247
      %v328 = vunpack.c.l.b16 %v248
      %v329 = vunpack.c.l.b16 %v249
      %v330 = vunpack.c.l.b16 %v250
      %v331 = vpack.c.b16 %v316, %v315
      %v332 = vpack.c.b16 %v318, %v317
      %v333 = vpack.c.b16 %v320, %v319
      %v334 = vpack.c.b16 %v322, %v321
      %v335 = vpack.c.b16 %v324, %v323
      %v336 = vpack.c.b16 %v326, %v325
      %v337 = vpack.c.b16 %v328, %v327
      %v338 = vpack.c.b16 %v330, %v329
      %347 = vmatprep.subr.bf16.mxu0 0
      %348 = vmatpush1.bf16.msra.mxu0 %v331
      %349 = vmatprep.subr.bf16.mxu0 0
      %350 = vmatpush1.bf16.msra.mxu0 %v332
      %351 = vmatprep.subr.bf16.mxu0 0
      %352 = vmatpush1.bf16.msra.mxu0 %v333
      %353 = vmatprep.subr.bf16.mxu0 0
      %354 = vmatpush1.bf16.msra.mxu0 %v334
      %355 = vmatprep.subr.bf16.mxu0 0
      %356 = vmatpush1.bf16.msra.mxu0 %v335
      %357 = vmatprep.subr.bf16.mxu0 0
      %358 = vmatpush1.bf16.msra.mxu0 %v336
      %359 = vmatprep.subr.bf16.mxu0 0
      %360 = vmatpush1.bf16.msra.mxu0 %v337
      %361 = vmatprep.subr.bf16.mxu0 0
      %362 = vmatpush1.bf16.msra.mxu0 %v338
      %363 = vmatprep.subr.bf16.mxu0 0
      %364 = vmatpush1.bf16.msra.mxu0 0
      %365 = vmatprep.subr.bf16.mxu0 0
      %366 = vmatpush1.bf16.msra.mxu0 0
      %367 = vmatprep.subr.bf16.mxu0 0
      %368 = vmatpush1.bf16.msra.mxu0 0
      %369 = vmatprep.subr.bf16.mxu0 0
      %370 = vmatpush1.bf16.msra.mxu0 0
      %371 = vmatprep.subr.bf16.mxu0 0
      %372 = vmatpush1.bf16.msra.mxu0 0
      %373 = vmatprep.subr.bf16.mxu0 0
      %374 = vmatpush1.bf16.msra.mxu0 0
      %375 = vmatprep.subr.bf16.mxu0 0
      %376 = vmatpush1.bf16.msra.mxu0 0
      %377 = vmatprep.subr.bf16.mxu0 0
      %378 = vmatpush1.bf16.msra.mxu0 0
      %379 = vmatprep.mubr.bf16.mxu0 0
      %380 = vmatmul.mubr.bf16.gmra.mrb[0].mxu0 %v283
      %v381 = vpop.f32.mrb[0].mxu0
      %v382 = vadd.f32 0.0, %v381
      %v383 = vpop.f32.mrb[0].mxu0
      %v384 = vpop.f32.mrb[0].mxu0
      %v385 = vadd.f32 0.0, %v384
      %v386 = vpop.f32.mrb[0].mxu0
      %387 = vmatprep.mubr.bf16.mxu0 0
      %388 = vmatmul.mubr.bf16.gmra.mrb[0].mxu0 %v284
      %v389 = vpop.f32.mrb[0].mxu0
      %v390 = vadd.f32 0.0, %v389
      %v391 = vpop.f32.mrb[0].mxu0
      %v392 = vpop.f32.mrb[0].mxu0
      %v393 = vadd.f32 0.0, %v392
      %v394 = vpop.f32.mrb[0].mxu0
      %395 = vmatprep.mubr.bf16.mxu0 0
      %396 = vmatmul.mubr.bf16.gmra.mrb[0].mxu0 %v285
      %v397 = vpop.f32.mrb[0].mxu0
      %v398 = vadd.f32 0.0, %v397
      %v399 = vpop.f32.mrb[0].mxu0
      %v400 = vpop.f32.mrb[0].mxu0
      %v401 = vadd.f32 0.0, %v400
      %v402 = vpop.f32.mrb[0].mxu0
      %403 = vmatprep.mubr.bf16.mxu0 0
      %404 = vmatmul.mubr.bf16.gmra.mrb[0].mxu0 %v286
      %v405 = vpop.f32.mrb[0].mxu0
      %v406 = vadd.f32 0.0, %v405
      %v407 = vpop.f32.mrb[0].mxu0
      %v408 = vpop.f32.mrb[0].mxu0
      %v409 = vadd.f32 0.0, %v408
      %v410 = vpop.f32.mrb[0].mxu0
      %411 = vmatprep.mubr.bf16.mxu0 0
      %412 = vmatmul.mubr.bf16.gmra.mrb[0].mxu0 %v287
      %v413 = vpop.f32.mrb[0].mxu0
      %v414 = vadd.f32 0.0, %v413
      %v415 = vpop.f32.mrb[0].mxu0
      %v416 = vpop.f32.mrb[0].mxu0
      %v417 = vadd.f32 0.0, %v416
      %v418 = vpop.f32.mrb[0].mxu0
      %419 = vmatprep.mubr.bf16.mxu0 0
      %420 = vmatmul.mubr.bf16.gmra.mrb[0].mxu0 %v288
      %v421 = vpop.f32.mrb[0].mxu0
      %v422 = vadd.f32 0.0, %v421
      %v423 = vpop.f32.mrb[0].mxu0
      %v424 = vpop.f32.mrb[0].mxu0
      %v425 = vadd.f32 0.0, %v424
      %v426 = vpop.f32.mrb[0].mxu0
      %427 = vmatprep.mubr.bf16.mxu0 0
      %428 = vmatmul.mubr.bf16.gmra.mrb[0].mxu0 %v289
      %v429 = vpop.f32.mrb[0].mxu0
      %v430 = vadd.f32 0.0, %v429
      %v431 = vpop.f32.mrb[0].mxu0
      %v432 = vpop.f32.mrb[0].mxu0
      %v433 = vadd.f32 0.0, %v432
      %v434 = vpop.f32.mrb[0].mxu0
      %435 = vmatprep.mubr.bf16.mxu0 0
      %436 = vmatmul.mubr.bf16.gmra.mrb[0].mxu0 %v290
      %v437 = vpop.f32.mrb[0].mxu0
      %v438 = vadd.f32 0.0, %v437
      %v439 = vpop.f32.mrb[0].mxu0
      %v440 = vpop.f32.mrb[0].mxu0
      %v441 = vadd.f32 0.0, %v440
      %v442 = vpop.f32.mrb[0].mxu0
      %443 = vdwg.mxu0
      %v444 = vpack.c.bf16 %v385, %v382
      %v445 = vpack.c.bf16 %v393, %v390
      %v446 = vpack.c.bf16 %v401, %v398
      %v447 = vpack.c.bf16 %v409, %v406
      %v448 = vpack.c.bf16 %v417, %v414
      %v449 = vpack.c.bf16 %v425, %v422
      %v450 = vpack.c.bf16 %v433, %v430
      %v451 = vpack.c.bf16 %v441, %v438
      %v460 = vunpack.c.l.b16 %v444
      %v461 = vunpack.c.h.b16 %v444
      %v462 = vunpack.c.l.b16 %v445
      %v463 = vunpack.c.h.b16 %v445
      %v464 = vunpack.c.l.b16 %v446
      %v465 = vunpack.c.h.b16 %v446
      %v466 = vunpack.c.l.b16 %v447
      %v467 = vunpack.c.h.b16 %v447
      %v468 = vunpack.c.l.b16 %v448
      %v469 = vunpack.c.h.b16 %v448
      %v470 = vunpack.c.l.b16 %v449
      %v471 = vunpack.c.h.b16 %v449
      %v472 = vunpack.c.l.b16 %v450
      %v473 = vunpack.c.h.b16 %v450
      %v474 = vunpack.c.l.b16 %v451
      %v475 = vunpack.c.h.b16 %v451
      %v476 = vpack.c.b16 %v460, %v460
      %v477 = vpack.c.b16 %v461, %v461
      %v478 = vpack.c.b16 %v462, %v462
      %v479 = vpack.c.b16 %v463, %v463
      %v480 = vpack.c.b16 %v464, %v464
      %v481 = vpack.c.b16 %v465, %v465
      %v482 = vpack.c.b16 %v466, %v466
      %v483 = vpack.c.b16 %v467, %v467
      %v484 = vpack.c.b16 %v468, %v468
      %v485 = vpack.c.b16 %v469, %v469
      %v486 = vpack.c.b16 %v470, %v470
      %v487 = vpack.c.b16 %v471, %v471
      %v488 = vpack.c.b16 %v472, %v472
      %v489 = vpack.c.b16 %v473, %v473
      %v490 = vpack.c.b16 %v474, %v474
      %v491 = vpack.c.b16 %v475, %v475
      %508 = vst [vmem:[%s210] sm:$0xf] %v476
      %509 = vst [vmem:[%s210 + $0x4] sm:$0xf] %v477
      %510 = vst [vmem:[%s210 + $0x8] sm:$0xf] %v478
      %511 = vst [vmem:[%s210 + $0xc] sm:$0xf] %v479
      %512 = vst [vmem:[%s210 + $0x10] sm:$0xf] %v480
      %513 = vst [vmem:[%s210 + $0x14] sm:$0xf] %v481
      %514 = vst [vmem:[%s210 + $0x18] sm:$0xf] %v482
      %515 = vst [vmem:[%s210 + $0x1c] sm:$0xf] %v483
      %516 = vst [vmem:[%s210 + $0x20] sm:$0xf] %v484
      %517 = vst [vmem:[%s210 + $0x24] sm:$0xf] %v485
      %518 = vst [vmem:[%s210 + $0x28] sm:$0xf] %v486
      %519 = vst [vmem:[%s210 + $0x2c] sm:$0xf] %v487
      %520 = vst [vmem:[%s210 + $0x30] sm:$0xf] %v488
      %521 = vst [vmem:[%s210 + $0x34] sm:$0xf] %v489
      %522 = vst [vmem:[%s210 + $0x38] sm:$0xf] %v490
      %523 = vst [vmem:[%s210 + $0x3c] sm:$0xf] %v491
      %v524 = vadd.f32 %v382, %v385
      %v525 = vadd.f32 %v524, %v390
      %v526 = vadd.f32 %v525, %v393
      %v527 = vadd.f32 %v526, %v398
      %v528 = vadd.f32 %v527, %v401
      %v529 = vadd.f32 %v528, %v406
      %v530 = vadd.f32 %v529, %v409
      %v531 = vadd.f32 %v530, %v414
      %v532 = vadd.f32 %v531, %v417
      %v533 = vadd.f32 %v532, %v422
      %v534 = vadd.f32 %v533, %v425
      %v535 = vadd.f32 %v534, %v430
      %v536 = vadd.f32 %v535, %v433
      %v537 = vadd.f32 %v536, %v438
      %v538 = vadd.f32 %v537, %v441
      %v539 = vrot.slane %v538, 4
      %v540 = vadd.f32 %v538, %v539
      %v541 = vrot.slane %v540, 2
      %v542 = vadd.f32 %v540, %v541
      %v543 = vrot.slane %v542, 1
      %v544 = vadd.f32 %v542, %v543
      %545 = vst [vmem:[%s214] sm:$0x1] %v544
      %v546 = vmul.f32 %v382, %v382
      %v547 = vmul.f32 %v385, %v385
      %v548 = vmul.f32 %v390, %v390
      %v549 = vmul.f32 %v393, %v393
      %v550 = vmul.f32 %v398, %v398
      %v551 = vmul.f32 %v401, %v401
      %v552 = vmul.f32 %v406, %v406
      %v553 = vmul.f32 %v409, %v409
      %v554 = vmul.f32 %v414, %v414
      %v555 = vmul.f32 %v417, %v417
      %v556 = vmul.f32 %v422, %v422
      %v557 = vmul.f32 %v425, %v425
      %v558 = vmul.f32 %v430, %v430
      %v559 = vmul.f32 %v433, %v433
      %v560 = vmul.f32 %v438, %v438
      %v561 = vmul.f32 %v441, %v441
      %v562 = vadd.f32 %v546, %v547
      %v563 = vadd.f32 %v562, %v548
      %v564 = vadd.f32 %v563, %v549
      %v565 = vadd.f32 %v564, %v550
      %v566 = vadd.f32 %v565, %v551
      %v567 = vadd.f32 %v566, %v552
      %v568 = vadd.f32 %v567, %v553
      %v569 = vadd.f32 %v568, %v554
      %v570 = vadd.f32 %v569, %v555
      %v571 = vadd.f32 %v570, %v556
      %v572 = vadd.f32 %v571, %v557
      %v573 = vadd.f32 %v572, %v558
      %v574 = vadd.f32 %v573, %v559
      %v575 = vadd.f32 %v574, %v560
      %v576 = vadd.f32 %v575, %v561
      %v577 = vrot.slane %v576, 4
      %v578 = vadd.f32 %v576, %v577
      %v579 = vrot.slane %v578, 2
      %v580 = vadd.f32 %v578, %v579
      %v581 = vrot.slane %v580, 1
      %v582 = vadd.f32 %v580, %v581
      %583 = vst [vmem:[%s217] sm:$0x1] %v582
      %s584 = smul.u32 16, %s16
      %p585 = scmp.lt.s32.totalorder %s584, 63
      %s586 = scalar_select %p585, %s584, 63
      %s587 = smul.addr %s586, 4
      %s588 = scalar_lea.vmem %s2, %s587
      %p589 = scmp.lt.s32.totalorder %s16, 3
      %s590 = scalar_select %p589, %s16, 3
      %s591 = scalar_lea.vmem %s3, %s590
      %p592 = scmp.lt.s32.totalorder %s16, 3
      %s593 = scalar_select %p592, %s16, 3
      %s594 = scalar_lea.vmem %s4, %s593
      // Predicated region
      $region29: #{_basic_block_forward.3} parent=27 // pred_check
        %p595 = pneg %p81
      $region30: #{_basic_block_forward.3} parent=27 // pred_check_branch
        %597 = sbr.rel (%p595) target = $region32
      $region31: #{_basic_block_forward.3} parent=27 // pred_region
        %s598 = smul.u32 16, %s16
      $region32: #{_basic_block_forward.3} parent=27 // pred_fallthru
        _
      // Predicated region
      $region33: #{_basic_block_forward.3} parent=27 // pred_check
        %p599 = pneg %p107
      $region34: #{_basic_block_forward.3} parent=27 // pred_check_branch
        %601 = sbr.rel (%p599) target = $region36
      $region35: #{_basic_block_forward.3} parent=27 // pred_region
        _
      $region36: #{_basic_block_forward.3} parent=27 // pred_fallthru
        _
      // Predicated region
      $region37: #{_basic_block_forward.3} parent=27 // pred_check
        %p602 = pneg %p133
      $region38: #{_basic_block_forward.3} parent=27 // pred_check_branch
        %604 = sbr.rel (%p602) target = $region40
      $region39: #{_basic_block_forward.3} parent=27 // pred_region
        _
      $region40: #{_basic_block_forward.3} parent=27 // pred_fallthru
        _
    $region28: #{_basic_block_forward.3} parent=5 // pred_fallthru
      _
    %p605 = scmp.le.s32.totalorder 2, %s11
    // Predicated region
    $region41: #{_basic_block_forward.3} parent=5 // pred_check
      %p606 = pneg %p605
    $region42: #{_basic_block_forward.3} parent=5 // pred_check_branch
      %608 = sbr.rel (%p606) target = $region44
    $region43: #{_basic_block_forward.3} parent=5 // pred_region
      %s609 = ssub.s32 %s11, 2
      // Predicated region
      $region45: #{_basic_block_forward.3} parent=43 // pred_check
        %p610 = pneg %p87
      $region46: #{_basic_block_forward.3} parent=43 // pred_check_branch
        %612 = sbr.rel (%p610) target = $region48
      $region47: #{_basic_block_forward.3} parent=43 // pred_region
        %s613 = smul.u32 16, %s17
        %p614 = scmp.lt.s32.totalorder %s613, 63
        %s615 = scalar_select %p614, %s613, 63
        %s616 = smul.addr %s615, 4
        %s617 = scalar_lea.vmem %s2, %s616
      $region48: #{_basic_block_forward.3} parent=43 // pred_fallthru
        _
      // Predicated region
      $region49: #{_basic_block_forward.3} parent=43 // pred_check
        %p618 = pneg %p113
      $region50: #{_basic_block_forward.3} parent=43 // pred_check_branch
        %620 = sbr.rel (%p618) target = $region52
      $region51: #{_basic_block_forward.3} parent=43 // pred_region
        %p621 = scmp.lt.s32.totalorder %s17, 3
        %s622 = scalar_select %p621, %s17, 3
        %s623 = scalar_lea.vmem %s3, %s622
      $region52: #{_basic_block_forward.3} parent=43 // pred_fallthru
        _
      // Predicated region
      $region53: #{_basic_block_forward.3} parent=43 // pred_check
        %p624 = pneg %p139
      $region54: #{_basic_block_forward.3} parent=43 // pred_check_branch
        %626 = sbr.rel (%p624) target = $region56
      $region55: #{_basic_block_forward.3} parent=43 // pred_region
        %p627 = scmp.lt.s32.totalorder %s17, 3
        %s628 = scalar_select %p627, %s17, 3
        %s629 = scalar_lea.vmem %s4, %s628
      $region56: #{_basic_block_forward.3} parent=43 // pred_fallthru
        _
    $region44: #{_basic_block_forward.3} parent=5 // pred_fallthru
      _
  $region6: #{_basic_block_forward.3} parent=0 // loop_footer
    %s15 = sadd.s32 1, %s11
  $region7: #{_basic_block_forward.3} parent=0 // loop_footer_branch
    %10 = sbr.rel target = $region3
  $region8: #{_basic_block_forward.3} parent=0 // loop_exit
    _

// kernel: _basic_block_forward.5
$region0: #{_basic_block_forward.5}
  #allocation0 [shape = 'u32[]', space=smem, size = 0x4, offset = 0x4, fixed_abs, tag = 'smem constant byte address 0x4 - core index']
  #allocation1 [shape = 'u32[144,128]{1,0:T(1,128)}', space=vmem, size = 0x12000, scoped, tag = 'internal scratch']
  %s0 = inlined_call_operand.vmem [shape: bf16[512,128], index: 0, kind: input, shape index: {}, may-alias: {0,6}]
  %s1 = inlined_call_operand.vmem [shape: f32[1,128], index: 1, kind: input, shape index: {}]
  %s2 = inlined_call_operand.vmem [shape: f32[1,128], index: 2, kind: input, shape index: {}]
  %s3 = inlined_call_operand.vmem [shape: bf16[512,128], index: 3, kind: input, shape index: {}]
  %s4 = inlined_call_operand.vmem [shape: f32[1,128], index: 4, kind: input, shape index: {}]
  %s5 = inlined_call_operand.vmem [shape: f32[1,128], index: 5, kind: input, shape index: {}]
  %s6 = inlined_call_operand.vmem [shape: bf16[512,128], index: 6, kind: output, shape index: {}, may-alias: {0,6}]
  %s7 = sld [smem:[#allocation0]]
  $region57: #{_basic_block_forward.5} parent=0
    _
  %s9 = ssub.s32 1, %s7
  %s10 = scalar_select 0, %s9, %s7
  loop: start=0, step=1, limit=6
  $region2: #{_basic_block_forward.5} parent=0 // loop_pre_header
    _
  $region3: #{_basic_block_forward.5} parent=0 // loop_header
    %s12 = sphi 0, %s16
    %p13 = scmp.ge.s32.totalorder %s12, 6
    %s22 = sphi 0, %s24
    %s25 = sphi 0, %s22
    %s26 = sphi 0, %s25
    %s42 = sphi 0, %s26
    %s46 = sphi 0, %s46
    %s48 = sphi 0, %s46
    %s49 = sphi 0, %s48
    %s63 = sphi 0, %s49
    %s67 = sphi 0, %s67
    %s69 = sphi 0, %s67
    %s70 = sphi 0, %s69
    %s84 = sphi 0, %s70
    %s90 = sphi 0, %s92
    %s93 = sphi 0, %s90
    %s94 = sphi 0, %s93
    %s110 = sphi 0, %s94
    %s114 = sphi 0, %s114
    %s116 = sphi 0, %s114
    %s117 = sphi 0, %s116
    %s131 = sphi 0, %s117
    %s135 = sphi 0, %s135
    %s137 = sphi 0, %s135
    %s138 = sphi 0, %s137
    %s152 = sphi 0, %s138
    %s158 = sphi 0, %s160
    %s161 = sphi 0, %s158
    %s162 = sphi 0, %s161
    %s178 = sphi 0, %s162
  $region4: #{_basic_block_forward.5} parent=0 // loop_header_branch
    %15 = sbr.rel (%p13) target = $region8
  $region5: #{_basic_block_forward.5} parent=0 // loop_body
    %s17 = ssub.s32 %s12, 1
    %s18 = ssub.s32 %s12, 2
    %s19 = sadd.s32 %s12, 1
    %s20 = ssub.s32 %s12, %s19
    %p21 = scmp.eq.s32.totalorder %s20, 0
    %s23 = sadd.s32 %s22, 1
    %s24 = scalar_select %p21, %s22, %s23
    %p27 = pneg %p21
    %p28 = scmp.eq.s32.totalorder %s12, 3
    %p29 = por %p27, %p28
    %p30 = scmp.ne.s32.totalorder %s22, %s25
    %p31 = scmp.eq.s32.totalorder %s12, 0
    %p32 = por %p30, %p31
    %p33 = scmp.ne.s32.totalorder %s22, %s25
    %p34 = scmp.eq.s32.totalorder %s17, 3
    %p35 = por %p33, %p34
    %p36 = scmp.ne.s32.totalorder %s25, %s26
    %p37 = scmp.eq.s32.totalorder %s17, 0
    %p38 = por %p36, %p37
    %p39 = scmp.ne.s32.totalorder %s25, %s26
    %p40 = scmp.eq.s32.totalorder %s18, 3
    %p41 = por %p39, %p40
    %p43 = scmp.ne.s32.totalorder %s26, %s42
    %p44 = scmp.eq.s32.totalorder %s18, 0
    %p45 = por %p43, %p44
    %s47 = sadd.s32 %s46, 1
    %p50 = scmp.eq.s32.totalorder %s12, 3
    %p51 = scmp.ne.s32.totalorder %s46, %s48
    %p52 = scmp.eq.s32.totalorder %s12, 0
    %p53 = por %p51, %p52
    %p54 = scmp.ne.s32.totalorder %s46, %s48
    %p55 = scmp.eq.s32.totalorder %s17, 3
    %p56 = por %p54, %p55
    %p57 = scmp.ne.s32.totalorder %s48, %s49
    %p58 = scmp.eq.s32.totalorder %s17, 0
    %p59 = por %p57, %p58
    %p60 = scmp.ne.s32.totalorder %s48, %s49
    %p61 = scmp.eq.s32.totalorder %s18, 3
    %p62 = por %p60, %p61
    %p64 = scmp.ne.s32.totalorder %s49, %s63
    %p65 = scmp.eq.s32.totalorder %s18, 0
    %p66 = por %p64, %p65
    %s68 = sadd.s32 %s67, 1
    %p71 = scmp.eq.s32.totalorder %s12, 3
    %p72 = scmp.ne.s32.totalorder %s67, %s69
    %p73 = scmp.eq.s32.totalorder %s12, 0
    %p74 = por %p72, %p73
    %p75 = scmp.ne.s32.totalorder %s67, %s69
    %p76 = scmp.eq.s32.totalorder %s17, 3
    %p77 = por %p75, %p76
    %p78 = scmp.ne.s32.totalorder %s69, %s70
    %p79 = scmp.eq.s32.totalorder %s17, 0
    %p80 = por %p78, %p79
    %p81 = scmp.ne.s32.totalorder %s69, %s70
    %p82 = scmp.eq.s32.totalorder %s18, 3
    %p83 = por %p81, %p82
    %p85 = scmp.ne.s32.totalorder %s70, %s84
    %p86 = scmp.eq.s32.totalorder %s18, 0
    %p87 = por %p85, %p86
    %s88 = ssub.s32 %s12, %s19
    %p89 = scmp.eq.s32.totalorder %s88, 0
    %s91 = sadd.s32 %s90, 1
    %s92 = scalar_select %p89, %s90, %s91
    %p95 = pneg %p89
    %p96 = scmp.eq.s32.totalorder %s12, 3
    %p97 = por %p95, %p96
    %p98 = scmp.ne.s32.totalorder %s90, %s93
    %p99 = scmp.eq.s32.totalorder %s12, 0
    %p100 = por %p98, %p99
    %p101 = scmp.ne.s32.totalorder %s90, %s93
    %p102 = scmp.eq.s32.totalorder %s17, 3
    %p103 = por %p101, %p102
    %p104 = scmp.ne.s32.totalorder %s93, %s94
    %p105 = scmp.eq.s32.totalorder %s17, 0
    %p106 = por %p104, %p105
    %p107 = scmp.ne.s32.totalorder %s93, %s94
    %p108 = scmp.eq.s32.totalorder %s18, 3
    %p109 = por %p107, %p108
    %p111 = scmp.ne.s32.totalorder %s94, %s110
    %p112 = scmp.eq.s32.totalorder %s18, 0
    %p113 = por %p111, %p112
    %s115 = sadd.s32 %s114, 1
    %p118 = scmp.eq.s32.totalorder %s12, 3
    %p119 = scmp.ne.s32.totalorder %s114, %s116
    %p120 = scmp.eq.s32.totalorder %s12, 0
    %p121 = por %p119, %p120
    %p122 = scmp.ne.s32.totalorder %s114, %s116
    %p123 = scmp.eq.s32.totalorder %s17, 3
    %p124 = por %p122, %p123
    %p125 = scmp.ne.s32.totalorder %s116, %s117
    %p126 = scmp.eq.s32.totalorder %s17, 0
    %p127 = por %p125, %p126
    %p128 = scmp.ne.s32.totalorder %s116, %s117
    %p129 = scmp.eq.s32.totalorder %s18, 3
    %p130 = por %p128, %p129
    %p132 = scmp.ne.s32.totalorder %s117, %s131
    %p133 = scmp.eq.s32.totalorder %s18, 0
    %p134 = por %p132, %p133
    %s136 = sadd.s32 %s135, 1
    %p139 = scmp.eq.s32.totalorder %s12, 3
    %p140 = scmp.ne.s32.totalorder %s135, %s137
    %p141 = scmp.eq.s32.totalorder %s12, 0
    %p142 = por %p140, %p141
    %p143 = scmp.ne.s32.totalorder %s135, %s137
    %p144 = scmp.eq.s32.totalorder %s17, 3
    %p145 = por %p143, %p144
    %p146 = scmp.ne.s32.totalorder %s137, %s138
    %p147 = scmp.eq.s32.totalorder %s17, 0
    %p148 = por %p146, %p147
    %p149 = scmp.ne.s32.totalorder %s137, %s138
    %p150 = scmp.eq.s32.totalorder %s18, 3
    %p151 = por %p149, %p150
    %p153 = scmp.ne.s32.totalorder %s138, %s152
    %p154 = scmp.eq.s32.totalorder %s18, 0
    %p155 = por %p153, %p154
    %s156 = ssub.s32 %s12, %s19
    %p157 = scmp.eq.s32.totalorder %s156, 0
    %s159 = sadd.s32 %s158, 1
    %s160 = scalar_select %p157, %s158, %s159
    %p163 = pneg %p157
    %p164 = scmp.eq.s32.totalorder %s12, 3
    %p165 = por %p163, %p164
    %p166 = scmp.ne.s32.totalorder %s158, %s161
    %p167 = scmp.eq.s32.totalorder %s12, 0
    %p168 = por %p166, %p167
    %p169 = scmp.ne.s32.totalorder %s158, %s161
    %p170 = scmp.eq.s32.totalorder %s17, 3
    %p171 = por %p169, %p170
    %p172 = scmp.ne.s32.totalorder %s161, %s162
    %p173 = scmp.eq.s32.totalorder %s17, 0
    %p174 = por %p172, %p173
    %p175 = scmp.ne.s32.totalorder %s161, %s162
    %p176 = scmp.eq.s32.totalorder %s18, 3
    %p177 = por %p175, %p176
    %p179 = scmp.ne.s32.totalorder %s162, %s178
    %p180 = scmp.eq.s32.totalorder %s18, 0
    %p181 = por %p179, %p180
    %p182 = scmp.le.s32.totalorder 1, %s12
    %p183 = scmp.lt.s32.totalorder %s12, 5
    %p184 = pnand %p182, %p183
    %p185 = pneg %p184
    // Predicated region
    $region9: #{_basic_block_forward.5} parent=5 // pred_check
      _
    $region10: #{_basic_block_forward.5} parent=5 // pred_check_branch
      %187 = sbr.rel (%p184) target = $region12
    $region11: #{_basic_block_forward.5} parent=5 // pred_region
      %s188 = ssub.s32 %s12, 1
      // Predicated region
      $region13: #{_basic_block_forward.5} parent=11 // pred_check
        %p189 = pneg %p59
      $region14: #{_basic_block_forward.5} parent=11 // pred_check_branch
        %191 = sbr.rel (%p189) target = $region16
      $region15: #{_basic_block_forward.5} parent=11 // pred_region
        _
      $region16: #{_basic_block_forward.5} parent=11 // pred_fallthru
        _
      // Predicated region
      $region17: #{_basic_block_forward.5} parent=11 // pred_check
        %p192 = pneg %p80
      $region18: #{_basic_block_forward.5} parent=11 // pred_check_branch
        %194 = sbr.rel (%p192) target = $region20
      $region19: #{_basic_block_forward.5} parent=11 // pred_region
        _
      $region20: #{_basic_block_forward.5} parent=11 // pred_fallthru
        _
      // Predicated region
      $region21: #{_basic_block_forward.5} parent=11 // pred_check
        %p195 = pneg %p127
      $region22: #{_basic_block_forward.5} parent=11 // pred_check_branch
        %197 = sbr.rel (%p195) target = $region24
      $region23: #{_basic_block_forward.5} parent=11 // pred_region
        _
      $region24: #{_basic_block_forward.5} parent=11 // pred_fallthru
        _
      // Predicated region
      $region25: #{_basic_block_forward.5} parent=11 // pred_check
        %p198 = pneg %p148
      $region26: #{_basic_block_forward.5} parent=11 // pred_check_branch
        %200 = sbr.rel (%p198) target = $region28
      $region27: #{_basic_block_forward.5} parent=11 // pred_region
        _
      $region28: #{_basic_block_forward.5} parent=11 // pred_fallthru
        _
    $region12: #{_basic_block_forward.5} parent=5 // pred_fallthru
      _
    %p201 = scmp.lt.s32.totalorder %s12, 4
    // Predicated region
    $region29: #{_basic_block_forward.5} parent=5 // pred_check
      %p202 = pneg %p201
    $region30: #{_basic_block_forward.5} parent=5 // pred_check_branch
      %204 = sbr.rel (%p202) target = $region32
    $region31: #{_basic_block_forward.5} parent=5 // pred_region
      // Predicated region
      $region33: #{_basic_block_forward.5} parent=31 // pred_check
        %p205 = pneg %p32
      $region34: #{_basic_block_forward.5} parent=31 // pred_check_branch
        %207 = sbr.rel (%p205) target = $region36
      $region35: #{_basic_block_forward.5} parent=31 // pred_region
        %s208 = smul.u32 16, %s12
        %p209 = scmp.lt.s32.totalorder %s208, 63
        %s210 = scalar_select %p209, %s208, 63
        %s211 = smul.addr %s210, 4
        %s212 = scalar_lea.vmem %s0, %s211
        %s213 = smul.u32 16, %s12
      $region36: #{_basic_block_forward.5} parent=31 // pred_fallthru
        _
      // Predicated region
      $region37: #{_basic_block_forward.5} parent=31 // pred_check
        %p214 = pneg %p100
      $region38: #{_basic_block_forward.5} parent=31 // pred_check_branch
        %216 = sbr.rel (%p214) target = $region40
      $region39: #{_basic_block_forward.5} parent=31 // pred_region
        %s217 = smul.u32 16, %s12
        %p218 = scmp.lt.s32.totalorder %s217, 63
        %s219 = scalar_select %p218, %s217, 63
        %s220 = smul.addr %s219, 4
        %s221 = scalar_lea.vmem %s3, %s220
        %s222 = smul.u32 16, %s12
      $region40: #{_basic_block_forward.5} parent=31 // pred_fallthru
        _
    $region32: #{_basic_block_forward.5} parent=5 // pred_fallthru
      _
    %p223 = scmp.le.s32.totalorder 1, %s12
    %p224 = scmp.lt.s32.totalorder %s12, 5
    %p225 = pnand %p223, %p224
    %p226 = pneg %p225
    // Predicated region
    $region41: #{_basic_block_forward.5} parent=5 // pred_check
      _
    $region42: #{_basic_block_forward.5} parent=5 // pred_check_branch
      %228 = sbr.rel (%p225) target = $region44
    $region43: #{_basic_block_forward.5} parent=5 // pred_region
      %s229 = ssub.s32 %s12, 1
      %s230 = smul.u32 16, %s17
      %p231 = scmp.lt.s32.totalorder %s230, 63
      %s232 = scalar_select %p231, %s230, 63
      %s233 = smul.addr %s232, 4
      %s234 = scalar_lea.vmem %s0, %s233
      %p235 = pneg %p38
      %p236 = pneg %p35
      %p237 = pneg %p59
      %p238 = pneg %p56
      %p239 = pneg %p80
      %p240 = pneg %p77
      %s241 = smul.u32 16, %s17
      %p242 = scmp.lt.s32.totalorder %s241, 63
      %s243 = scalar_select %p242, %s241, 63
      %s244 = smul.addr %s243, 4
      %s245 = scalar_lea.vmem %s3, %s244
      %p246 = pneg %p106
      %p247 = pneg %p103
      %p248 = pneg %p127
      %p249 = pneg %p124
      %p250 = pneg %p148
      %p251 = pneg %p145
      %p252 = pneg %p174
      %p253 = pneg %p171
      %s254 = smul.u32 16, %s17
      %p255 = scmp.lt.s32.totalorder %s254, 63
      %s256 = scalar_select %p255, %s254, 63
      %s257 = smul.addr %s256, 4
      %s258 = scalar_lea.vmem %s6, %s257
      %s259 = smul.u32 16, %s17
      %p260 = scmp.lt.s32.totalorder %s259, 63
      %s261 = scalar_select %p260, %s259, 63
      %s262 = smul.addr %s261, 4
      %s263 = scalar_lea.vmem %s0, %s262
      %s264 = smul.u32 16, %s17
      %s265 = smul.u32 16, %s17
      %p266 = scmp.lt.s32.totalorder %s265, 63
      %s267 = scalar_select %p266, %s265, 63
      %s268 = smul.addr %s267, 4
      %s269 = scalar_lea.vmem %s3, %s268
      %s270 = smul.u32 16, %s17
      %s271 = smul.u32 16, %s17
      %p272 = scmp.lt.s32.totalorder %s271, 63
      %s273 = scalar_select %p272, %s271, 63
      %s274 = smul.addr %s273, 4
      %s275 = scalar_lea.vmem %s6, %s274
      %s276 = smul.u32 16, %s17
      %v277 = vld [vmem:[%s263] sm:$0xf]
      %v278 = vld [vmem:[%s263 + $0x4] sm:$0xf]
      %v279 = vld [vmem:[%s263 + $0x8] sm:$0xf]
      %v280 = vld [vmem:[%s263 + $0xc] sm:$0xf]
      %v281 = vld [vmem:[%s263 + $0x10] sm:$0xf]
      %v282 = vld [vmem:[%s263 + $0x14] sm:$0xf]
      %v283 = vld [vmem:[%s263 + $0x18] sm:$0xf]
      %v284 = vld [vmem:[%s263 + $0x1c] sm:$0xf]
      %v285 = vld [vmem:[%s263 + $0x20] sm:$0xf]
      %v286 = vld [vmem:[%s263 + $0x24] sm:$0xf]
      %v287 = vld [vmem:[%s263 + $0x28] sm:$0xf]
      %v288 = vld [vmem:[%s263 + $0x2c] sm:$0xf]
      %v289 = vld [vmem:[%s263 + $0x30] sm:$0xf]
      %v290 = vld [vmem:[%s263 + $0x34] sm:$0xf]
      %v291 = vld [vmem:[%s263 + $0x38] sm:$0xf]
      %v292 = vld [vmem:[%s263 + $0x3c] sm:$0xf]
      %v293 = vunpack.c.l.bf16 %v277
      %v294 = vunpack.c.l.bf16 %v278
      %v295 = vunpack.c.l.bf16 %v279
      %v296 = vunpack.c.l.bf16 %v280
      %v297 = vunpack.c.l.bf16 %v281
      %v298 = vunpack.c.l.bf16 %v282
      %v299 = vunpack.c.l.bf16 %v283
      %v300 = vunpack.c.l.bf16 %v284
      %v301 = vunpack.c.l.bf16 %v285
      %v302 = vunpack.c.l.bf16 %v286
      %v303 = vunpack.c.l.bf16 %v287
      %v304 = vunpack.c.l.bf16 %v288
      %v305 = vunpack.c.l.bf16 %v289
      %v306 = vunpack.c.l.bf16 %v290
      %v307 = vunpack.c.l.bf16 %v291
      %v308 = vunpack.c.l.bf16 %v292
      %v309 = vld [vmem:[%s1] sm:$0x1]
      %v311 = vlaneseq
      %v312 = vshrl.u32 %v311, 7
      %v313 = vsub.s32 0, %v312
      %v314 = vrot.slane %v309, %v313
      %v316 = vmul.f32 %v293, %v314
      %v317 = vmul.f32 %v294, %v314
      %v318 = vmul.f32 %v295, %v314
      %v319 = vmul.f32 %v296, %v314
      %v320 = vmul.f32 %v297, %v314
      %v321 = vmul.f32 %v298, %v314
      %v322 = vmul.f32 %v299, %v314
      %v323 = vmul.f32 %v300, %v314
      %v324 = vmul.f32 %v301, %v314
      %v325 = vmul.f32 %v302, %v314
      %v326 = vmul.f32 %v303, %v314
      %v327 = vmul.f32 %v304, %v314
      %v328 = vmul.f32 %v305, %v314
      %v329 = vmul.f32 %v306, %v314
      %v330 = vmul.f32 %v307, %v314
      %v331 = vmul.f32 %v308, %v314
      %v332 = vld [vmem:[%s2] sm:$0x1]
      %v334 = vlaneseq
      %v335 = vshrl.u32 %v334, 7
      %v336 = vsub.s32 0, %v335
      %v337 = vrot.slane %v332, %v336
      %v339 = vadd.f32 %v316, %v337
      %v340 = vadd.f32 %v317, %v337
      %v341 = vadd.f32 %v318, %v337
      %v342 = vadd.f32 %v319, %v337
      %v343 = vadd.f32 %v320, %v337
      %v344 = vadd.f32 %v321, %v337
      %v345 = vadd.f32 %v322, %v337
      %v346 = vadd.f32 %v323, %v337
      %v347 = vadd.f32 %v324, %v337
      %v348 = vadd.f32 %v325, %v337
      %v349 = vadd.f32 %v326, %v337
      %v350 = vadd.f32 %v327, %v337
      %v351 = vadd.f32 %v328, %v337
      %v352 = vadd.f32 %v329, %v337
      %v353 = vadd.f32 %v330, %v337
      %v354 = vadd.f32 %v331, %v337
      %v355 = vld [vmem:[%s269] sm:$0xf]
      %v356 = vld [vmem:[%s269 + $0x4] sm:$0xf]
      %v357 = vld [vmem:[%s269 + $0x8] sm:$0xf]
      %v358 = vld [vmem:[%s269 + $0xc] sm:$0xf]
      %v359 = vld [vmem:[%s269 + $0x10] sm:$0xf]
      %v360 = vld [vmem:[%s269 + $0x14] sm:$0xf]
      %v361 = vld [vmem:[%s269 + $0x18] sm:$0xf]
      %v362 = vld [vmem:[%s269 + $0x1c] sm:$0xf]
      %v363 = vld [vmem:[%s269 + $0x20] sm:$0xf]
      %v364 = vld [vmem:[%s269 + $0x24] sm:$0xf]
      %v365 = vld [vmem:[%s269 + $0x28] sm:$0xf]
      %v366 = vld [vmem:[%s269 + $0x2c] sm:$0xf]
      %v367 = vld [vmem:[%s269 + $0x30] sm:$0xf]
      %v368 = vld [vmem:[%s269 + $0x34] sm:$0xf]
      %v369 = vld [vmem:[%s269 + $0x38] sm:$0xf]
      %v370 = vld [vmem:[%s269 + $0x3c] sm:$0xf]
      %v371 = vunpack.c.l.bf16 %v355
      %v372 = vunpack.c.l.bf16 %v356
      %v373 = vunpack.c.l.bf16 %v357
      %v374 = vunpack.c.l.bf16 %v358
      %v375 = vunpack.c.l.bf16 %v359
      %v376 = vunpack.c.l.bf16 %v360
      %v377 = vunpack.c.l.bf16 %v361
      %v378 = vunpack.c.l.bf16 %v362
      %v379 = vunpack.c.l.bf16 %v363
      %v380 = vunpack.c.l.bf16 %v364
      %v381 = vunpack.c.l.bf16 %v365
      %v382 = vunpack.c.l.bf16 %v366
      %v383 = vunpack.c.l.bf16 %v367
      %v384 = vunpack.c.l.bf16 %v368
      %v385 = vunpack.c.l.bf16 %v369
      %v386 = vunpack.c.l.bf16 %v370
      %v387 = vld [vmem:[%s4] sm:$0x1]
      %v389 = vlaneseq
      %v390 = vshrl.u32 %v389, 7
      %v391 = vsub.s32 0, %v390
      %v392 = vrot.slane %v387, %v391
      %v394 = vmul.f32 %v371, %v392
      %v395 = vmul.f32 %v372, %v392
      %v396 = vmul.f32 %v373, %v392
      %v397 = vmul.f32 %v374, %v392
      %v398 = vmul.f32 %v375, %v392
      %v399 = vmul.f32 %v376, %v392
      %v400 = vmul.f32 %v377, %v392
      %v401 = vmul.f32 %v378, %v392
      %v402 = vmul.f32 %v379, %v392
      %v403 = vmul.f32 %v380, %v392
      %v404 = vmul.f32 %v381, %v392
      %v405 = vmul.f32 %v382, %v392
      %v406 = vmul.f32 %v383, %v392
      %v407 = vmul.f32 %v384, %v392
      %v408 = vmul.f32 %v385, %v392
      %v409 = vmul.f32 %v386, %v392
      %v410 = vadd.f32 %v339, %v394
      %v411 = vadd.f32 %v340, %v395
      %v412 = vadd.f32 %v341, %v396
      %v413 = vadd.f32 %v342, %v397
      %v414 = vadd.f32 %v343, %v398
      %v415 = vadd.f32 %v344, %v399
      %v416 = vadd.f32 %v345, %v400
      %v417 = vadd.f32 %v346, %v401
      %v418 = vadd.f32 %v347, %v402
      %v419 = vadd.f32 %v348, %v403
      %v420 = vadd.f32 %v349, %v404
      %v421 = vadd.f32 %v350, %v405
      %v422 = vadd.f32 %v351, %v406
      %v423 = vadd.f32 %v352, %v407
      %v424 = vadd.f32 %v353, %v408
      %v425 = vadd.f32 %v354, %v409
      %v426 = vld [vmem:[%s5] sm:$0x1]
      %v428 = vlaneseq
      %v429 = vshrl.u32 %v428, 7
      %v430 = vsub.s32 0, %v429
      %v431 = vrot.slane %v426, %v430
      %v433 = vadd.f32 %v410, %v431
      %v434 = vadd.f32 %v411, %v431
      %v435 = vadd.f32 %v412, %v431
      %v436 = vadd.f32 %v413, %v431
      %v437 = vadd.f32 %v414, %v431
      %v438 = vadd.f32 %v415, %v431
      %v439 = vadd.f32 %v416, %v431
      %v440 = vadd.f32 %v417, %v431
      %v441 = vadd.f32 %v418, %v431
      %v442 = vadd.f32 %v419, %v431
      %v443 = vadd.f32 %v420, %v431
      %v444 = vadd.f32 %v421, %v431
      %v445 = vadd.f32 %v422, %v431
      %v446 = vadd.f32 %v423, %v431
      %v447 = vadd.f32 %v424, %v431
      %v448 = vadd.f32 %v425, %v431
      %v449 = vmax.f32 %v433, 0.0
      %v450 = vmax.f32 %v434, 0.0
      %v451 = vmax.f32 %v435, 0.0
      %v452 = vmax.f32 %v436, 0.0
      %v453 = vmax.f32 %v437, 0.0
      %v454 = vmax.f32 %v438, 0.0
      %v455 = vmax.f32 %v439, 0.0
      %v456 = vmax.f32 %v440, 0.0
      %v457 = vmax.f32 %v441, 0.0
      %v458 = vmax.f32 %v442, 0.0
      %v459 = vmax.f32 %v443, 0.0
      %v460 = vmax.f32 %v444, 0.0
      %v461 = vmax.f32 %v445, 0.0
      %v462 = vmax.f32 %v446, 0.0
      %v463 = vmax.f32 %v447, 0.0
      %v464 = vmax.f32 %v448, 0.0
      %v465 = vpack.c.bf16 %v450, %v449
      %v466 = vpack.c.bf16 %v452, %v451
      %v467 = vpack.c.bf16 %v454, %v453
      %v468 = vpack.c.bf16 %v456, %v455
      %v469 = vpack.c.bf16 %v458, %v457
      %v470 = vpack.c.bf16 %v460, %v459
      %v471 = vpack.c.bf16 %v462, %v461
      %v472 = vpack.c.bf16 %v464, %v463
      %v481 = vunpack.c.l.b16 %v465
      %v482 = vunpack.c.h.b16 %v465
      %v483 = vunpack.c.l.b16 %v466
      %v484 = vunpack.c.h.b16 %v466
      %v485 = vunpack.c.l.b16 %v467
      %v486 = vunpack.c.h.b16 %v467
      %v487 = vunpack.c.l.b16 %v468
      %v488 = vunpack.c.h.b16 %v468
      %v489 = vunpack.c.l.b16 %v469
      %v490 = vunpack.c.h.b16 %v469
      %v491 = vunpack.c.l.b16 %v470
      %v492 = vunpack.c.h.b16 %v470
      %v493 = vunpack.c.l.b16 %v471
      %v494 = vunpack.c.h.b16 %v471
      %v495 = vunpack.c.l.b16 %v472
      %v496 = vunpack.c.h.b16 %v472
      %v497 = vpack.c.b16 %v481, %v481
      %v498 = vpack.c.b16 %v482, %v482
      %v499 = vpack.c.b16 %v483, %v483
      %v500 = vpack.c.b16 %v484, %v484
      %v501 = vpack.c.b16 %v485, %v485
      %v502 = vpack.c.b16 %v486, %v486
      %v503 = vpack.c.b16 %v487, %v487
      %v504 = vpack.c.b16 %v488, %v488
      %v505 = vpack.c.b16 %v489, %v489
      %v506 = vpack.c.b16 %v490, %v490
      %v507 = vpack.c.b16 %v491, %v491
      %v508 = vpack.c.b16 %v492, %v492
      %v509 = vpack.c.b16 %v493, %v493
      %v510 = vpack.c.b16 %v494, %v494
      %v511 = vpack.c.b16 %v495, %v495
      %v512 = vpack.c.b16 %v496, %v496
      %529 = vst [vmem:[%s275] sm:$0xf] %v497
      %530 = vst [vmem:[%s275 + $0x4] sm:$0xf] %v498
      %531 = vst [vmem:[%s275 + $0x8] sm:$0xf] %v499
      %532 = vst [vmem:[%s275 + $0xc] sm:$0xf] %v500
      %533 = vst [vmem:[%s275 + $0x10] sm:$0xf] %v501
      %534 = vst [vmem:[%s275 + $0x14] sm:$0xf] %v502
      %535 = vst [vmem:[%s275 + $0x18] sm:$0xf] %v503
      %536 = vst [vmem:[%s275 + $0x1c] sm:$0xf] %v504
      %537 = vst [vmem:[%s275 + $0x20] sm:$0xf] %v505
      %538 = vst [vmem:[%s275 + $0x24] sm:$0xf] %v506
      %539 = vst [vmem:[%s275 + $0x28] sm:$0xf] %v507
      %540 = vst [vmem:[%s275 + $0x2c] sm:$0xf] %v508
      %541 = vst [vmem:[%s275 + $0x30] sm:$0xf] %v509
      %542 = vst [vmem:[%s275 + $0x34] sm:$0xf] %v510
      %543 = vst [vmem:[%s275 + $0x38] sm:$0xf] %v511
      %544 = vst [vmem:[%s275 + $0x3c] sm:$0xf] %v512
      %s545 = smul.u32 16, %s17
      %p546 = scmp.lt.s32.totalorder %s545, 63
      %s547 = scalar_select %p546, %s545, 63
      %s548 = smul.addr %s547, 4
      %s549 = scalar_lea.vmem %s6, %s548
      // Predicated region
      $region45: #{_basic_block_forward.5} parent=43 // pred_check
        %p550 = pneg %p171
      $region46: #{_basic_block_forward.5} parent=43 // pred_check_branch
        %552 = sbr.rel (%p550) target = $region48
      $region47: #{_basic_block_forward.5} parent=43 // pred_region
        %s553 = smul.u32 16, %s17
      $region48: #{_basic_block_forward.5} parent=43 // pred_fallthru
        _
    $region44: #{_basic_block_forward.5} parent=5 // pred_fallthru
      _
    %p554 = scmp.le.s32.totalorder 2, %s12
    // Predicated region
    $region49: #{_basic_block_forward.5} parent=5 // pred_check
      %p555 = pneg %p554
    $region50: #{_basic_block_forward.5} parent=5 // pred_check_branch
      %557 = sbr.rel (%p555) target = $region52
    $region51: #{_basic_block_forward.5} parent=5 // pred_region
      %s558 = ssub.s32 %s12, 2
      // Predicated region
      $region53: #{_basic_block_forward.5} parent=51 // pred_check
        %p559 = pneg %p177
      $region54: #{_basic_block_forward.5} parent=51 // pred_check_branch
        %561 = sbr.rel (%p559) target = $region56
      $region55: #{_basic_block_forward.5} parent=51 // pred_region
        %s562 = smul.u32 16, %s18
        %p563 = scmp.lt.s32.totalorder %s562, 63
        %s564 = scalar_select %p563, %s562, 63
        %s565 = smul.addr %s564, 4
        %s566 = scalar_lea.vmem %s6, %s565
      $region56: #{_basic_block_forward.5} parent=51 // pred_fallthru
        _
    $region52: #{_basic_block_forward.5} parent=5 // pred_fallthru
      _
  $region6: #{_basic_block_forward.5} parent=0 // loop_footer
    %s16 = sadd.s32 1, %s12
  $region7: #{_basic_block_forward.5} parent=0 // loop_footer_branch
    %11 = sbr.rel target = $region3
  $region8: #{_basic_block_forward.5} parent=0 // loop_exit
    _

</llo_original>
